<compile_context>
chip_gen: v7x
topology: tpu7x:2x2x1
jax: 0.10.0
libtpu: 0.0.40
codegen_flags: <defaults>
</compile_context>

<pallas_src>
import jax
import jax.numpy as jnp
import numpy as np
from jax.experimental import pallas as pl
from jax.experimental.pallas import tpu as pltpu

HIDDEN_1 = 128   # fc1 width
HIDDEN_2 = 16    # fc2 width (feature vector)
SLAB = 128       # lane-dense output slab width per task (must be multiple of 128)


def _fcnet_kernel(x_ref, wb1f_ref, wb1_ref, wb2_ref, wout_ref, out_ref):
    """One grid step = one batch tile pushed through all T chained tasks.

    x_ref    : (bt, L*D)        flattened input (mean folded into wb1f)
    wb1f_ref : (L*D+1, H1)      task-0 fc1: tile(W1,(L,1))/L, bias appended as last row
    wb1_ref  : (T, D+1, H1)     fc1 weight+bias per task (used for t >= 1)
    wb2_ref  : (T, H1+1, H2)    fc2 weight+bias per task
    wout_ref : (T, H2+1, SLAB)  fused [feature-copy | fc3] projection:
                                cols 0..H2-1 = identity (copies h2),
                                col H2 = fc3 weight; bias row holds b3 in lane H2.
    out_ref  : (bt, T*SLAB)     per task t: lanes [t*SLAB, t*SLAB+H2) = feature vec,
                                lane t*SLAB+H2 = fc3 output. Lane-dense stores.
    """
    LD = x_ref.shape[1]
    T = wb1_ref.shape[0]
    D = wb1_ref.shape[1] - 1
    H1 = wb1_ref.shape[2]
    H2 = wb2_ref.shape[2]

    h = x_ref[...]                                     # (bt, L*D) for t==0
    # T is small and static: unroll so the scheduler sees the whole chain.
    for t in range(T):
        if t == 0:
            w1 = wb1f_ref[:LD, :]                      # (L*D, 128) folded mean
            b1 = wb1f_ref[LD:LD + 1, :]                # (1, 128)
        else:
            w1 = wb1_ref[t, :D, :]                     # (16, 128)
            b1 = wb1_ref[t, D:D + 1, :]                # (1, 128)
        h1 = jnp.maximum(
            jnp.dot(h, w1, preferred_element_type=jnp.float32) + b1, 0.0)

        w2 = wb2_ref[t, :H1, :]                        # (128, 16)
        b2 = wb2_ref[t, H1:H1 + 1, :]                  # (1, 16)
        h2 = jnp.maximum(
            jnp.dot(h1, w2, preferred_element_type=jnp.float32) + b2, 0.0)

        wo = wout_ref[t, :H2, :]                       # (16, 128)
        bo = wout_ref[t, H2:H2 + 1, :]                 # (1, 128)
        slab = jnp.dot(h2, wo, preferred_element_type=jnp.float32) + bo  # (bt, 128)

        # Full-128-lane unmasked store (static, tile-aligned lane offset).
        out_ref[:, t * SLAB:(t + 1) * SLAB] = slab.astype(out_ref.dtype)

        h = h2   # PyTorch re-assigns `x`: next task's fc1 consumes this fc2 output


def _pack_params(params, L):
    """Fold biases into weight slabs, fold the mean into task-0 fc1, and build
    the fused lane-dense [feature | fc3] output projection."""
    w1, b1, w2, b2, w3, b3 = params            # (T,D,H1),(T,1,H1),(T,H1,H2),(T,1,H2),(T,H2,1),(T,1,1)
    T, D, H1 = w1.shape
    H2 = w2.shape[2]

    # x.mean(1) @ W1  ==  x.reshape(B, L*D) @ (tile(W1, (L, 1)) / L)
    w1f = jnp.tile(w1[0], (L, 1)) * (1.0 / float(L))          # (L*D, H1)
    wb1f = jnp.concatenate([w1f, b1[0]], axis=0)              # (L*D+1, H1)

    wb1 = jnp.concatenate([w1, b1], axis=1)                   # (T, D+1, H1)
    wb2 = jnp.concatenate([w2, b2], axis=1)                   # (T, H1+1, H2)

    eye = jnp.broadcast_to(jnp.eye(H2, dtype=jnp.float32), (T, H2, H2))
    wo = jnp.zeros((T, H2, SLAB), jnp.float32)
    wo = wo.at[:, :, :H2].set(eye)                            # copy h2 into lanes 0..15
    wo = wo.at[:, :, H2:H2 + 1].set(w3)                       # fc3 weight into lane 16
    bo = jnp.zeros((T, 1, SLAB), jnp.float32)
    bo = bo.at[:, :, H2:H2 + 1].set(b3)                       # fc3 bias into lane 16
    wout = jnp.concatenate([wo, bo], axis=1)                  # (T, H2+1, SLAB)
    return wb1f, wb1, wb2, wout


def fcnet_forward(x, params, *, batch_tile=None):
    """Returns (outputs: (T, B), feature_vecs: (T, B, 16), None).
    Stacked arrays (caller indexes per task) — cheaper than per-task device slices."""
    B, L, D = x.shape
    w1, b1, w2, b2, w3, b3 = params
    T, Dw, H1 = w1.shape
    H2 = w2.shape[2]
    assert Dw == D
    if T > 1:
        # Same constraint PyTorch imposes implicitly via the chained `x`.
        assert D == H2, "chained tasks require inp_size == hidden_dim_2 (=16)"

    bt = B if batch_tile is None else batch_tile
    assert B % bt == 0 and (bt == B or bt % 8 == 0), "batch tile must divide B (mult of 8)"

    LD = L * D
    xflat = x.reshape(B, LD).astype(jnp.float32)
    wb1f, wb1p, wb2p, woutp = _pack_params(params, L)

    grid_spec = pltpu.PrefetchScalarGridSpec(
        num_scalar_prefetch=0,
        grid=(B // bt,),
        in_specs=[
            pl.BlockSpec((bt, LD), lambda b: (b, 0)),                 # x (batch-tiled)
            pl.BlockSpec((LD + 1, H1), lambda b: (0, 0)),             # folded fc1 (task 0)
            pl.BlockSpec((T, D + 1, H1), lambda b: (0, 0, 0)),        # fc1 (tasks >= 1)
            pl.BlockSpec((T, H1 + 1, H2), lambda b: (0, 0, 0)),       # fc2
            pl.BlockSpec((T, H2 + 1, SLAB), lambda b: (0, 0, 0)),     # fused feat|fc3
        ],
        out_specs=pl.BlockSpec((bt, T * SLAB), lambda b: (b, 0)),     # lane-dense slab
    )

    out = pl.pallas_call(
        _fcnet_kernel,
        out_shape=jax.ShapeDtypeStruct((B, T * SLAB), jnp.float32),
        grid_spec=grid_spec,
        compiler_params=pltpu.CompilerParams(
            dimension_semantics=("parallel",)),   # batch tiles are independent (v7x 2 TCs)
    )(xflat, wb1f, wb1p, wb2p, woutp)

    # One cheap reshape/transpose pair; no per-task Python-list fan-out.
    out3 = out.reshape(B, T, SLAB)
    feature_vecs = jnp.transpose(out3[:, :, :H2], (1, 0, 2))   # (T, B, 16)
    outputs = jnp.transpose(out3[:, :, H2], (1, 0))            # (T, B)
    return outputs, feature_vecs, None


def _linear_init(key, fan_in, fan_out):
    # Matches torch.nn.Linear default: U(-1/sqrt(fan_in), 1/sqrt(fan_in)).
    kw, kb = jax.random.split(key)
    bound = 1.0 / np.sqrt(fan_in)
    w = jax.random.uniform(kw, (fan_in, fan_out), jnp.float32, -bound, bound)
    b = jax.random.uniform(kb, (1, fan_out), jnp.float32, -bound, bound)
    return w, b


def init_fcnet_params(key, inp_size, task_num):
    w1s, b1s, w2s, b2s, w3s, b3s = [], [], [], [], [], []
    keys = jax.random.split(key, 3 * task_num)
    for i in range(task_num):
        w1, b1 = _linear_init(keys[3 * i + 0], inp_size, HIDDEN_1)
        w2, b2 = _linear_init(keys[3 * i + 1], HIDDEN_1, HIDDEN_2)
        w3, b3 = _linear_init(keys[3 * i + 2], HIDDEN_2, 1)
        w1s.append(w1); b1s.append(b1)
        w2s.append(w2); b2s.append(b2)
        w3s.append(w3); b3s.append(b3)
    return (jnp.stack(w1s), jnp.stack(b1s),
            jnp.stack(w2s), jnp.stack(b2s),
            jnp.stack(w3s), jnp.stack(b3s))


def fcnet_reference(x, params):
    # Pure-JAX reference reproducing the PyTorch forward exactly.
    w1, b1, w2, b2, w3, b3 = params
    T = w1.shape[0]
    h = jnp.mean(x, axis=1) if x.shape[1] > 1 else x[:, 0, :]
    outputs, feats = [], []
    for i in range(T):
        h = jax.nn.relu(h @ w1[i] + b1[i])
        h = jax.nn.relu(h @ w2[i] + b2[i])
        feats.append(h)
        outputs.append((h @ w3[i] + b3[i]).reshape(-1))
    return outputs, feats, None


if __name__ == "__main__":
    B, L, D, T = 8, 8, 16, 2   # batch, inp_len, inp_size, task_num
    key = jax.random.PRNGKey(0)
    kx, kp = jax.random.split(key)
    x = jax.random.normal(kx, (B, L, D), dtype=jnp.float32)
    params = init_fcnet_params(kp, D, T)

    outputs, feature_vecs, extra = fcnet_forward(x, params)
    jax.block_until_ready((outputs, feature_vecs))

    ref_outputs, ref_feats, _ = fcnet_reference(x, params)
    for i in range(T):
        np.testing.assert_allclose(np.asarray(outputs[i]),
                                   np.asarray(ref_outputs[i]),
                                   rtol=1e-3, atol=1e-3)
        np.testing.assert_allclose(np.asarray(feature_vecs[i]),
                                   np.asarray(ref_feats[i]),
                                   rtol=1e-3, atol=1e-3)
    assert extra is None

    print("KERNEL_OK")
</pallas_src>

<mosaic_0001>
module attributes {stable_mosaic.version = 11 : i64} {
  func.func @_fcnet_kernel(%arg0: i32, %arg1: memref<8x128xf32, #tpu.memory_space<vmem>>, %arg2: memref<129x128xf32, #tpu.memory_space<vmem>>, %arg3: memref<2x17x128xf32, #tpu.memory_space<vmem>>, %arg4: memref<2x129x16xf32, #tpu.memory_space<vmem>>, %arg5: memref<2x17x128xf32, #tpu.memory_space<vmem>>, %arg6: memref<8x256xf32, #tpu.memory_space<vmem>>) attributes {dimension_semantics = [#tpu.dimension_semantics<parallel>], iteration_bounds = array<i64: 1>, scalar_prefetch = 0 : i64, scratch_operands = 0 : i64, tpu.core_type = #tpu.core_type<tc>, window_params = [{transform_indices = @transform_0, window_bounds = array<i64: 8, 128>}, {pipeline_mode = #tpu.pipeline_mode<synchronous>, transform_indices = @transform_1, window_bounds = array<i64: 129, 128>}, {pipeline_mode = #tpu.pipeline_mode<synchronous>, transform_indices = @transform_2, window_bounds = array<i64: 2, 17, 128>}, {pipeline_mode = #tpu.pipeline_mode<synchronous>, transform_indices = @transform_3, window_bounds = array<i64: 2, 129, 16>}, {pipeline_mode = #tpu.pipeline_mode<synchronous>, transform_indices = @transform_4, window_bounds = array<i64: 2, 17, 128>}, {transform_indices = @transform_5, window_bounds = array<i64: 8, 256>}]} {
    %c0 = arith.constant 0 : index
    %c0_0 = arith.constant 0 : index
    %0 = vector.load %arg1[%c0, %c0_0] : memref<8x128xf32, #tpu.memory_space<vmem>>, vector<8x128xf32>
    %c0_1 = arith.constant 0 : index
    %c0_2 = arith.constant 0 : index
    %1 = vector.load %arg2[%c0_1, %c0_2] : memref<129x128xf32, #tpu.memory_space<vmem>>, vector<128x128xf32>
    %c128 = arith.constant 128 : index
    %c0_3 = arith.constant 0 : index
    %2 = vector.load %arg2[%c128, %c0_3] : memref<129x128xf32, #tpu.memory_space<vmem>>, vector<1x128xf32>
    %cst = arith.constant dense<0.000000e+00> : vector<8x128xf32>
    %3 = tpu.matmul %0, %1, %cst {dimension_numbers = #tpu.dot_dimension_numbers<[1], [0], [0], [1], [0, 0, 1, 1], [], []>} : vector<8x128xf32>, vector<128x128xf32>, vector<8x128xf32> -> vector<8x128xf32>
    %4 = vector.broadcast %2 : vector<1x128xf32> to vector<8x128xf32>
    %5 = arith.addf %3, %4 : vector<8x128xf32>
    %cst_4 = arith.constant 0.000000e+00 : f32
    %6 = vector.broadcast %cst_4 : f32 to vector<8x128xf32>
    %7 = arith.maximumf %5, %6 : vector<8x128xf32>
    %c0_5 = arith.constant 0 : index
    %c0_6 = arith.constant 0 : index
    %c0_7 = arith.constant 0 : index
    %8 = vector.load %arg4[%c0_5, %c0_6, %c0_7] : memref<2x129x16xf32, #tpu.memory_space<vmem>>, vector<1x128x16xf32>
    %9 = vector.shape_cast %8 : vector<1x128x16xf32> to vector<128x16xf32>
    %c0_8 = arith.constant 0 : index
    %c128_9 = arith.constant 128 : index
    %c0_10 = arith.constant 0 : index
    %10 = vector.load %arg4[%c0_8, %c128_9, %c0_10] : memref<2x129x16xf32, #tpu.memory_space<vmem>>, vector<1x1x16xf32>
    %11 = vector.shape_cast %10 : vector<1x1x16xf32> to vector<1x16xf32>
    %cst_11 = arith.constant dense<0.000000e+00> : vector<8x16xf32>
    %12 = tpu.matmul %7, %9, %cst_11 {dimension_numbers = #tpu.dot_dimension_numbers<[1], [0], [0], [1], [0, 0, 1, 1], [], []>} : vector<8x128xf32>, vector<128x16xf32>, vector<8x16xf32> -> vector<8x16xf32>
    %13 = vector.broadcast %11 : vector<1x16xf32> to vector<8x16xf32>
    %14 = arith.addf %12, %13 : vector<8x16xf32>
    %cst_12 = arith.constant 0.000000e+00 : f32
    %15 = vector.broadcast %cst_12 : f32 to vector<8x16xf32>
    %16 = arith.maximumf %14, %15 : vector<8x16xf32>
    %c0_13 = arith.constant 0 : index
    %c0_14 = arith.constant 0 : index
    %c0_15 = arith.constant 0 : index
    %17 = vector.load %arg5[%c0_13, %c0_14, %c0_15] : memref<2x17x128xf32, #tpu.memory_space<vmem>>, vector<1x16x128xf32>
    %18 = vector.shape_cast %17 : vector<1x16x128xf32> to vector<16x128xf32>
    %c0_16 = arith.constant 0 : index
    %c16 = arith.constant 16 : index
    %c0_17 = arith.constant 0 : index
    %19 = vector.load %arg5[%c0_16, %c16, %c0_17] : memref<2x17x128xf32, #tpu.memory_space<vmem>>, vector<1x1x128xf32>
    %20 = vector.shape_cast %19 : vector<1x1x128xf32> to vector<1x128xf32>
    %cst_18 = arith.constant dense<0.000000e+00> : vector<8x128xf32>
    %21 = tpu.matmul %16, %18, %cst_18 {dimension_numbers = #tpu.dot_dimension_numbers<[1], [0], [0], [1], [0, 0, 1, 1], [], []>} : vector<8x16xf32>, vector<16x128xf32>, vector<8x128xf32> -> vector<8x128xf32>
    %22 = vector.broadcast %20 : vector<1x128xf32> to vector<8x128xf32>
    %23 = arith.addf %21, %22 : vector<8x128xf32>
    %c0_19 = arith.constant 0 : index
    %c0_20 = arith.constant 0 : index
    %24 = vector.load %arg6[%c0_19, %c0_20] : memref<8x256xf32, #tpu.memory_space<vmem>>, vector<8x128xf32>
    tpu.vector_store %arg6[%c0_19, %c0_20], %23 {strides = array<i32>} : memref<8x256xf32, #tpu.memory_space<vmem>>, vector<8x128xf32>,
    %c1 = arith.constant 1 : index
    %c0_21 = arith.constant 0 : index
    %c0_22 = arith.constant 0 : index
    %25 = vector.load %arg3[%c1, %c0_21, %c0_22] : memref<2x17x128xf32, #tpu.memory_space<vmem>>, vector<1x16x128xf32>
    %26 = vector.shape_cast %25 : vector<1x16x128xf32> to vector<16x128xf32>
    %c1_23 = arith.constant 1 : index
    %c16_24 = arith.constant 16 : index
    %c0_25 = arith.constant 0 : index
    %27 = vector.load %arg3[%c1_23, %c16_24, %c0_25] : memref<2x17x128xf32, #tpu.memory_space<vmem>>, vector<1x1x128xf32>
    %28 = vector.shape_cast %27 : vector<1x1x128xf32> to vector<1x128xf32>
    %cst_26 = arith.constant dense<0.000000e+00> : vector<8x128xf32>
    %29 = tpu.matmul %16, %26, %cst_26 {dimension_numbers = #tpu.dot_dimension_numbers<[1], [0], [0], [1], [0, 0, 1, 1], [], []>} : vector<8x16xf32>, vector<16x128xf32>, vector<8x128xf32> -> vector<8x128xf32>
    %30 = vector.broadcast %28 : vector<1x128xf32> to vector<8x128xf32>
    %31 = arith.addf %29, %30 : vector<8x128xf32>
    %cst_27 = arith.constant 0.000000e+00 : f32
    %32 = vector.broadcast %cst_27 : f32 to vector<8x128xf32>
    %33 = arith.maximumf %31, %32 : vector<8x128xf32>
    %c1_28 = arith.constant 1 : index
    %c0_29 = arith.constant 0 : index
    %c0_30 = arith.constant 0 : index
    %34 = vector.load %arg4[%c1_28, %c0_29, %c0_30] : memref<2x129x16xf32, #tpu.memory_space<vmem>>, vector<1x128x16xf32>
    %35 = vector.shape_cast %34 : vector<1x128x16xf32> to vector<128x16xf32>
    %c1_31 = arith.constant 1 : index
    %c128_32 = arith.constant 128 : index
    %c0_33 = arith.constant 0 : index
    %36 = vector.load %arg4[%c1_31, %c128_32, %c0_33] : memref<2x129x16xf32, #tpu.memory_space<vmem>>, vector<1x1x16xf32>
    %37 = vector.shape_cast %36 : vector<1x1x16xf32> to vector<1x16xf32>
    %cst_34 = arith.constant dense<0.000000e+00> : vector<8x16xf32>
    %38 = tpu.matmul %33, %35, %cst_34 {dimension_numbers = #tpu.dot_dimension_numbers<[1], [0], [0], [1], [0, 0, 1, 1], [], []>} : vector<8x128xf32>, vector<128x16xf32>, vector<8x16xf32> -> vector<8x16xf32>
    %39 = vector.broadcast %37 : vector<1x16xf32> to vector<8x16xf32>
    %40 = arith.addf %38, %39 : vector<8x16xf32>
    %cst_35 = arith.constant 0.000000e+00 : f32
    %41 = vector.broadcast %cst_35 : f32 to vector<8x16xf32>
    %42 = arith.maximumf %40, %41 : vector<8x16xf32>
    %c1_36 = arith.constant 1 : index
    %c0_37 = arith.constant 0 : index
    %c0_38 = arith.constant 0 : index
    %43 = vector.load %arg5[%c1_36, %c0_37, %c0_38] : memref<2x17x128xf32, #tpu.memory_space<vmem>>, vector<1x16x128xf32>
    %44 = vector.shape_cast %43 : vector<1x16x128xf32> to vector<16x128xf32>
    %c1_39 = arith.constant 1 : index
    %c16_40 = arith.constant 16 : index
    %c0_41 = arith.constant 0 : index
    %45 = vector.load %arg5[%c1_39, %c16_40, %c0_41] : memref<2x17x128xf32, #tpu.memory_space<vmem>>, vector<1x1x128xf32>
    %46 = vector.shape_cast %45 : vector<1x1x128xf32> to vector<1x128xf32>
    %cst_42 = arith.constant dense<0.000000e+00> : vector<8x128xf32>
    %47 = tpu.matmul %42, %44, %cst_42 {dimension_numbers = #tpu.dot_dimension_numbers<[1], [0], [0], [1], [0, 0, 1, 1], [], []>} : vector<8x16xf32>, vector<16x128xf32>, vector<8x128xf32> -> vector<8x128xf32>
    %48 = vector.broadcast %46 : vector<1x128xf32> to vector<8x128xf32>
    %49 = arith.addf %47, %48 : vector<8x128xf32>
    %c0_43 = arith.constant 0 : index
    %c128_44 = arith.constant 128 : index
    %50 = vector.load %arg6[%c0_43, %c128_44] : memref<8x256xf32, #tpu.memory_space<vmem>>, vector<8x128xf32>
    tpu.vector_store %arg6[%c0_43, %c128_44], %49 {strides = array<i32>} : memref<8x256xf32, #tpu.memory_space<vmem>>, vector<8x128xf32>,
    return
  }
  func.func @transform_0(%arg0: i32) -> (i32, i32) {
    %c0_i32 = arith.constant 0 : i32
    %c0_i32_0 = arith.constant 0 : i32
    return %arg0, %c0_i32 : i32, i32
  }
  func.func @transform_1(%arg0: i32) -> (i32, i32) {
    %c0_i32 = arith.constant 0 : i32
    %c0_i32_0 = arith.constant 0 : i32
    %c0_i32_1 = arith.constant 0 : i32
    return %c0_i32, %c0_i32_0 : i32, i32
  }
  func.func @transform_2(%arg0: i32) -> (i32, i32, i32) {
    %c0_i32 = arith.constant 0 : i32
    %c0_i32_0 = arith.constant 0 : i32
    %c0_i32_1 = arith.constant 0 : i32
    %c0_i32_2 = arith.constant 0 : i32
    return %c0_i32, %c0_i32_0, %c0_i32_1 : i32, i32, i32
  }
  func.func @transform_3(%arg0: i32) -> (i32, i32, i32) {
    %c0_i32 = arith.constant 0 : i32
    %c0_i32_0 = arith.constant 0 : i32
    %c0_i32_1 = arith.constant 0 : i32
    %c0_i32_2 = arith.constant 0 : i32
    return %c0_i32, %c0_i32_0, %c0_i32_1 : i32, i32, i32
  }
  func.func @transform_4(%arg0: i32) -> (i32, i32, i32) {
    %c0_i32 = arith.constant 0 : i32
    %c0_i32_0 = arith.constant 0 : i32
    %c0_i32_1 = arith.constant 0 : i32
    %c0_i32_2 = arith.constant 0 : i32
    return %c0_i32, %c0_i32_0, %c0_i32_1 : i32, i32, i32
  }
  func.func @transform_5(%arg0: i32) -> (i32, i32) {
    %c0_i32 = arith.constant 0 : i32
    %c0_i32_0 = arith.constant 0 : i32
    return %arg0, %c0_i32 : i32, i32
  }
}

</mosaic_0001>

<llo_original>
// kernel: tpu_custom_call.1
$region0: #{tpu_custom_call.1}
  #allocation0 [shape = 'u32[]', space=smem, size = 0x4, offset = 0x4, fixed_abs, tag = 'smem constant byte address 0x4 - core index']
  #allocation1 [shape = 'u32[144,128]{1,0:T(1,128)}', space=vmem, size = 0x12000, scoped, tag = 'internal scratch']
  %s0 = inlined_call_operand.vmem [shape: f32[8,128], index: 0, kind: input, shape index: {}]
  %s1 = inlined_call_operand.vmem [shape: f32[129,128], index: 1, kind: input, shape index: {}]
  %s2 = inlined_call_operand.vmem [shape: f32[2,17,128], index: 2, kind: input, shape index: {}]
  %s3 = inlined_call_operand.vmem [shape: f32[2,129,16], index: 3, kind: input, shape index: {}]
  %s4 = inlined_call_operand.vmem [shape: f32[2,17,128], index: 4, kind: input, shape index: {}]
  %s5 = inlined_call_operand.hbm [shape: f32[8,256], index: 5, kind: output, shape index: {}]
  %s6 = sld [smem:[#allocation0]]
  $region30: #{tpu_custom_call.1} parent=0
    _
  %s8 = ssub.s32 1, %s6
  %s9 = scalar_select 0, %s8, %s6
  $region1: #{tpu_custom_call.1} parent=0
    #allocation2 [shape = 'u8[8192]{0}', space=vmem, size = 0x2000, scoped, tag = 'output window, operand 0, single buffered']
    #allocation3 [shape = 's32[1]{0}', space=sflag, size = 0x4, scoped, tag = 'scoped memory for tpu_custom_call.1']
    %10 = vsyncpa [#allocation3], 0
    // Predicated region
    $region2: #{tpu_custom_call.1} parent=1 // pred_check
      _
    $region3: #{tpu_custom_call.1} parent=1 // pred_check_branch
      %12 = sbr.rel (0) target = $region5
    $region4: #{tpu_custom_call.1} parent=1 // pred_region
      _
    $region5: #{tpu_custom_call.1} parent=1 // pred_fallthru
      _
    // Predicated region
    $region6: #{tpu_custom_call.1} parent=1 // pred_check
      _
    $region7: #{tpu_custom_call.1} parent=1 // pred_check_branch
      %14 = sbr.rel (0) target = $region9
    $region8: #{tpu_custom_call.1} parent=1 // pred_region
      _
    $region9: #{tpu_custom_call.1} parent=1 // pred_fallthru
      _
    // Predicated region
    $region10: #{tpu_custom_call.1} parent=1 // pred_check
      _
    $region11: #{tpu_custom_call.1} parent=1 // pred_check_branch
      %16 = sbr.rel (0) target = $region13
    $region12: #{tpu_custom_call.1} parent=1 // pred_region
      _
    $region13: #{tpu_custom_call.1} parent=1 // pred_fallthru
      _
    // Predicated region
    $region14: #{tpu_custom_call.1} parent=1 // pred_check
      _
    $region15: #{tpu_custom_call.1} parent=1 // pred_check_branch
      %18 = sbr.rel (0) target = $region17
    $region16: #{tpu_custom_call.1} parent=1 // pred_region
      _
    $region17: #{tpu_custom_call.1} parent=1 // pred_fallthru
      _
    // Predicated region
    $region18: #{tpu_custom_call.1} parent=1 // pred_check
      _
    $region19: #{tpu_custom_call.1} parent=1 // pred_check_branch
      %20 = sbr.rel (0) target = $region21
    $region20: #{tpu_custom_call.1} parent=1 // pred_region
      _
    $region21: #{tpu_custom_call.1} parent=1 // pred_fallthru
      _
    %v21 = vld [vmem:[%s0] sm:$0xff]
    %v22 = vld [vmem:[%s1] sm:$0xff]
    %v23 = vld [vmem:[%s1 + $0x8] sm:$0xff]
    %v24 = vld [vmem:[%s1 + $0x10] sm:$0xff]
    %v25 = vld [vmem:[%s1 + $0x18] sm:$0xff]
    %v26 = vld [vmem:[%s1 + $0x20] sm:$0xff]
    %v27 = vld [vmem:[%s1 + $0x28] sm:$0xff]
    %v28 = vld [vmem:[%s1 + $0x30] sm:$0xff]
    %v29 = vld [vmem:[%s1 + $0x38] sm:$0xff]
    %v30 = vld [vmem:[%s1 + $0x40] sm:$0xff]
    %v31 = vld [vmem:[%s1 + $0x48] sm:$0xff]
    %v32 = vld [vmem:[%s1 + $0x50] sm:$0xff]
    %v33 = vld [vmem:[%s1 + $0x58] sm:$0xff]
    %v34 = vld [vmem:[%s1 + $0x60] sm:$0xff]
    %v35 = vld [vmem:[%s1 + $0x68] sm:$0xff]
    %v36 = vld [vmem:[%s1 + $0x70] sm:$0xff]
    %v37 = vld [vmem:[%s1 + $0x78] sm:$0xff]
    %v38 = vld [vmem:[%s1 + $0x80] sm:$0x1]
    %v39 = vlaneseq
    %v40 = vshrl.u32 %v39, 7
    %v41 = vsub.s32 0, %v40
    %v42 = vrot.slane %v38, %v41
    %43 = vmatprep.subr.mxu0 0.0
    %44 = vmatpush1.msra.mxu0 %v22
    %45 = vmatprep.subr.mxu0 0.0
    %46 = vmatpush1.msra.mxu0 %v23
    %47 = vmatprep.subr.mxu0 0.0
    %48 = vmatpush1.msra.mxu0 %v24
    %49 = vmatprep.subr.mxu0 0.0
    %50 = vmatpush1.msra.mxu0 %v25
    %51 = vmatprep.subr.mxu0 0.0
    %52 = vmatpush1.msra.mxu0 %v26
    %53 = vmatprep.subr.mxu0 0.0
    %54 = vmatpush1.msra.mxu0 %v27
    %55 = vmatprep.subr.mxu0 0.0
    %56 = vmatpush1.msra.mxu0 %v28
    %57 = vmatprep.subr.mxu0 0.0
    %58 = vmatpush1.msra.mxu0 %v29
    %59 = vmatprep.subr.mxu0 0.0
    %60 = vmatpush1.msra.mxu0 %v30
    %61 = vmatprep.subr.mxu0 0.0
    %62 = vmatpush1.msra.mxu0 %v31
    %63 = vmatprep.subr.mxu0 0.0
    %64 = vmatpush1.msra.mxu0 %v32
    %65 = vmatprep.subr.mxu0 0.0
    %66 = vmatpush1.msra.mxu0 %v33
    %67 = vmatprep.subr.mxu0 0.0
    %68 = vmatpush1.msra.mxu0 %v34
    %69 = vmatprep.subr.mxu0 0.0
    %70 = vmatpush1.msra.mxu0 %v35
    %71 = vmatprep.subr.mxu0 0.0
    %72 = vmatpush1.msra.mxu0 %v36
    %73 = vmatprep.subr.mxu0 0.0
    %74 = vmatpush1.msra.mxu0 %v37
    %75 = vmatprep.subr.mxu0 0.0
    %76 = vmatpush1.msra.mxu0 0.0
    %77 = vmatprep.subr.mxu0 0.0
    %78 = vmatpush1.msra.mxu0 0.0
    %79 = vmatprep.subr.mxu0 0.0
    %80 = vmatpush1.msra.mxu0 0.0
    %81 = vmatprep.subr.mxu0 0.0
    %82 = vmatpush1.msra.mxu0 0.0
    %83 = vmatprep.subr.mxu0 0.0
    %84 = vmatpush1.msra.mxu0 0.0
    %85 = vmatprep.subr.mxu0 0.0
    %86 = vmatpush1.msra.mxu0 0.0
    %87 = vmatprep.subr.mxu0 0.0
    %88 = vmatpush1.msra.mxu0 0.0
    %89 = vmatprep.subr.mxu0 0.0
    %90 = vmatpush1.msra.mxu0 0.0
    %91 = vmatprep.subr.mxu0 0.0
    %92 = vmatpush1.msra.mxu0 0.0
    %93 = vmatprep.subr.mxu0 0.0
    %94 = vmatpush1.msra.mxu0 0.0
    %95 = vmatprep.subr.mxu0 0.0
    %96 = vmatpush1.msra.mxu0 0.0
    %97 = vmatprep.subr.mxu0 0.0
    %98 = vmatpush1.msra.mxu0 0.0
    %99 = vmatprep.subr.mxu0 0.0
    %100 = vmatpush1.msra.mxu0 0.0
    %101 = vmatprep.subr.mxu0 0.0
    %102 = vmatpush1.msra.mxu0 0.0
    %103 = vmatprep.subr.mxu0 0.0
    %104 = vmatpush1.msra.mxu0 0.0
    %105 = vmatprep.subr.mxu0 0.0
    %106 = vmatpush1.msra.mxu0 0.0
    %107 = vmatprep.mubr.f32.mxu0 0.0
    %108 = vmatmul.mubr.f32.gmra.mrb[0].mxu0 %v21
    %v109 = vpop.f32.mrb[0].mxu0
    %v110 = vadd.f32 %v42, %v109
    %v111 = vpop.f32.mrb[0].mxu0
    %112 = vdwg.mxu0
    %v113 = vmax.f32 %v110, 0.0
    %v114 = vld [vmem:[%s3] sm:$0xff]
    %v115 = vld [vmem:[%s3 + $0x8] sm:$0xff]
    %v116 = vld [vmem:[%s3 + $0x10] sm:$0xff]
    %v117 = vld [vmem:[%s3 + $0x18] sm:$0xff]
    %v118 = vld [vmem:[%s3 + $0x20] sm:$0xff]
    %v119 = vld [vmem:[%s3 + $0x28] sm:$0xff]
    %v120 = vld [vmem:[%s3 + $0x30] sm:$0xff]
    %v121 = vld [vmem:[%s3 + $0x38] sm:$0xff]
    %v122 = vld [vmem:[%s3 + $0x40] sm:$0xff]
    %v123 = vld [vmem:[%s3 + $0x48] sm:$0xff]
    %v124 = vld [vmem:[%s3 + $0x50] sm:$0xff]
    %v125 = vld [vmem:[%s3 + $0x58] sm:$0xff]
    %v126 = vld [vmem:[%s3 + $0x60] sm:$0xff]
    %v127 = vld [vmem:[%s3 + $0x68] sm:$0xff]
    %v128 = vld [vmem:[%s3 + $0x70] sm:$0xff]
    %v129 = vld [vmem:[%s3 + $0x78] sm:$0xff]
    %v130 = vld [vmem:[%s3 + $0x80] sm:$0x1]
    %v131 = vlaneseq
    %v132 = vshrl.u32 %v131, 7
    %v133 = vsub.s32 0, %v132
    %v134 = vrot.slane %v130, %v133
    %135 = vmatprep.subr.mxu0 0.0
    %136 = vmatpush1.msra.mxu0 %v114
    %137 = vmatprep.subr.mxu0 0.0
    %138 = vmatpush1.msra.mxu0 %v115
    %139 = vmatprep.subr.mxu0 0.0
    %140 = vmatpush1.msra.mxu0 %v116
    %141 = vmatprep.subr.mxu0 0.0
    %142 = vmatpush1.msra.mxu0 %v117
    %143 = vmatprep.subr.mxu0 0.0
    %144 = vmatpush1.msra.mxu0 %v118
    %145 = vmatprep.subr.mxu0 0.0
    %146 = vmatpush1.msra.mxu0 %v119
    %147 = vmatprep.subr.mxu0 0.0
    %148 = vmatpush1.msra.mxu0 %v120
    %149 = vmatprep.subr.mxu0 0.0
    %150 = vmatpush1.msra.mxu0 %v121
    %151 = vmatprep.subr.mxu0 0.0
    %152 = vmatpush1.msra.mxu0 %v122
    %153 = vmatprep.subr.mxu0 0.0
    %154 = vmatpush1.msra.mxu0 %v123
    %155 = vmatprep.subr.mxu0 0.0
    %156 = vmatpush1.msra.mxu0 %v124
    %157 = vmatprep.subr.mxu0 0.0
    %158 = vmatpush1.msra.mxu0 %v125
    %159 = vmatprep.subr.mxu0 0.0
    %160 = vmatpush1.msra.mxu0 %v126
    %161 = vmatprep.subr.mxu0 0.0
    %162 = vmatpush1.msra.mxu0 %v127
    %163 = vmatprep.subr.mxu0 0.0
    %164 = vmatpush1.msra.mxu0 %v128
    %165 = vmatprep.subr.mxu0 0.0
    %166 = vmatpush1.msra.mxu0 %v129
    %167 = vmatprep.subr.mxu0 0.0
    %168 = vmatpush1.msra.mxu0 0.0
    %169 = vmatprep.subr.mxu0 0.0
    %170 = vmatpush1.msra.mxu0 0.0
    %171 = vmatprep.subr.mxu0 0.0
    %172 = vmatpush1.msra.mxu0 0.0
    %173 = vmatprep.subr.mxu0 0.0
    %174 = vmatpush1.msra.mxu0 0.0
    %175 = vmatprep.subr.mxu0 0.0
    %176 = vmatpush1.msra.mxu0 0.0
    %177 = vmatprep.subr.mxu0 0.0
    %178 = vmatpush1.msra.mxu0 0.0
    %179 = vmatprep.subr.mxu0 0.0
    %180 = vmatpush1.msra.mxu0 0.0
    %181 = vmatprep.subr.mxu0 0.0
    %182 = vmatpush1.msra.mxu0 0.0
    %183 = vmatprep.subr.mxu0 0.0
    %184 = vmatpush1.msra.mxu0 0.0
    %185 = vmatprep.subr.mxu0 0.0
    %186 = vmatpush1.msra.mxu0 0.0
    %187 = vmatprep.subr.mxu0 0.0
    %188 = vmatpush1.msra.mxu0 0.0
    %189 = vmatprep.subr.mxu0 0.0
    %190 = vmatpush1.msra.mxu0 0.0
    %191 = vmatprep.subr.mxu0 0.0
    %192 = vmatpush1.msra.mxu0 0.0
    %193 = vmatprep.subr.mxu0 0.0
    %194 = vmatpush1.msra.mxu0 0.0
    %195 = vmatprep.subr.mxu0 0.0
    %196 = vmatpush1.msra.mxu0 0.0
    %197 = vmatprep.subr.mxu0 0.0
    %198 = vmatpush1.msra.mxu0 0.0
    %199 = vmatprep.mubr.f32.mxu0 0.0
    %200 = vmatmul.mubr.f32.gmra.mrb[0].mxu0 %v113
    %v201 = vpop.f32.mrb[0].mxu0
    %v202 = vadd.f32 %v134, %v201
    %v203 = vpop.f32.mrb[0].mxu0
    %204 = vdwg.mxu0
    %v205 = vmax.f32 %v202, 0.0
    %v206 = vld [vmem:[%s4] sm:$0xff]
    %v207 = vld [vmem:[%s4 + $0x8] sm:$0xff]
    %v208 = vld [vmem:[%s4 + $0x10] sm:$0x1]
    %v209 = vlaneseq
    %v210 = vshrl.u32 %v209, 7
    %v211 = vsub.s32 0, %v210
    %v212 = vrot.slane %v208, %v211
    %vm213 = vcmask 130048
    %v215 = vsel %vm213, %v205, 0
    %217 = vmatprep.subr.mxu0 0.0
    %218 = vmatpush1.msra.mxu0 %v206
    %219 = vmatprep.subr.mxu0 0.0
    %220 = vmatpush1.msra.mxu0 %v207
    %221 = vmatprep.subr.mxu0 0.0
    %222 = vmatpush1.msra.mxu0 0.0
    %223 = vmatprep.subr.mxu0 0.0
    %224 = vmatpush1.msra.mxu0 0.0
    %225 = vmatprep.subr.mxu0 0.0
    %226 = vmatpush1.msra.mxu0 0.0
    %227 = vmatprep.subr.mxu0 0.0
    %228 = vmatpush1.msra.mxu0 0.0
    %229 = vmatprep.subr.mxu0 0.0
    %230 = vmatpush1.msra.mxu0 0.0
    %231 = vmatprep.subr.mxu0 0.0
    %232 = vmatpush1.msra.mxu0 0.0
    %233 = vmatprep.subr.mxu0 0.0
    %234 = vmatpush1.msra.mxu0 0.0
    %235 = vmatprep.subr.mxu0 0.0
    %236 = vmatpush1.msra.mxu0 0.0
    %237 = vmatprep.subr.mxu0 0.0
    %238 = vmatpush1.msra.mxu0 0.0
    %239 = vmatprep.subr.mxu0 0.0
    %240 = vmatpush1.msra.mxu0 0.0
    %241 = vmatprep.subr.mxu0 0.0
    %242 = vmatpush1.msra.mxu0 0.0
    %243 = vmatprep.subr.mxu0 0.0
    %244 = vmatpush1.msra.mxu0 0.0
    %245 = vmatprep.subr.mxu0 0.0
    %246 = vmatpush1.msra.mxu0 0.0
    %247 = vmatprep.subr.mxu0 0.0
    %248 = vmatpush1.msra.mxu0 0.0
    %249 = vmatprep.subr.mxu0 0.0
    %250 = vmatpush1.msra.mxu0 0.0
    %251 = vmatprep.subr.mxu0 0.0
    %252 = vmatpush1.msra.mxu0 0.0
    %253 = vmatprep.subr.mxu0 0.0
    %254 = vmatpush1.msra.mxu0 0.0
    %255 = vmatprep.subr.mxu0 0.0
    %256 = vmatpush1.msra.mxu0 0.0
    %257 = vmatprep.subr.mxu0 0.0
    %258 = vmatpush1.msra.mxu0 0.0
    %259 = vmatprep.subr.mxu0 0.0
    %260 = vmatpush1.msra.mxu0 0.0
    %261 = vmatprep.subr.mxu0 0.0
    %262 = vmatpush1.msra.mxu0 0.0
    %263 = vmatprep.subr.mxu0 0.0
    %264 = vmatpush1.msra.mxu0 0.0
    %265 = vmatprep.subr.mxu0 0.0
    %266 = vmatpush1.msra.mxu0 0.0
    %267 = vmatprep.subr.mxu0 0.0
    %268 = vmatpush1.msra.mxu0 0.0
    %269 = vmatprep.subr.mxu0 0.0
    %270 = vmatpush1.msra.mxu0 0.0
    %271 = vmatprep.subr.mxu0 0.0
    %272 = vmatpush1.msra.mxu0 0.0
    %273 = vmatprep.subr.mxu0 0.0
    %274 = vmatpush1.msra.mxu0 0.0
    %275 = vmatprep.subr.mxu0 0.0
    %276 = vmatpush1.msra.mxu0 0.0
    %277 = vmatprep.subr.mxu0 0.0
    %278 = vmatpush1.msra.mxu0 0.0
    %279 = vmatprep.subr.mxu0 0.0
    %280 = vmatpush1.msra.mxu0 0.0
    %281 = vmatprep.mubr.f32.mxu0 0.0
    %282 = vmatmul.mubr.f32.gmra.mrb[0].mxu0 %v215
    %v283 = vpop.f32.mrb[0].mxu0
    %v284 = vadd.f32 %v212, %v283
    %v285 = vpop.f32.mrb[0].mxu0
    %286 = vdwg.mxu0
    %287 = vst [vmem:[#allocation2] sm:$0xff] %v284
    %s288 = scalar_lea.vmem %s2, 24
    %v289 = vld [vmem:[%s288] sm:$0xff]
    %v290 = vld [vmem:[%s288 + $0x8] sm:$0xff]
    %v291 = vld [vmem:[%s288 + $0x10] sm:$0x1]
    %v292 = vlaneseq
    %v293 = vshrl.u32 %v292, 7
    %v294 = vsub.s32 0, %v293
    %v295 = vrot.slane %v291, %v294
    %296 = vmatprep.subr.mxu0 0.0
    %297 = vmatpush1.msra.mxu0 %v289
    %298 = vmatprep.subr.mxu0 0.0
    %299 = vmatpush1.msra.mxu0 %v290
    %300 = vmatprep.subr.mxu0 0.0
    %301 = vmatpush1.msra.mxu0 0.0
    %302 = vmatprep.subr.mxu0 0.0
    %303 = vmatpush1.msra.mxu0 0.0
    %304 = vmatprep.subr.mxu0 0.0
    %305 = vmatpush1.msra.mxu0 0.0
    %306 = vmatprep.subr.mxu0 0.0
    %307 = vmatpush1.msra.mxu0 0.0
    %308 = vmatprep.subr.mxu0 0.0
    %309 = vmatpush1.msra.mxu0 0.0
    %310 = vmatprep.subr.mxu0 0.0
    %311 = vmatpush1.msra.mxu0 0.0
    %312 = vmatprep.subr.mxu0 0.0
    %313 = vmatpush1.msra.mxu0 0.0
    %314 = vmatprep.subr.mxu0 0.0
    %315 = vmatpush1.msra.mxu0 0.0
    %316 = vmatprep.subr.mxu0 0.0
    %317 = vmatpush1.msra.mxu0 0.0
    %318 = vmatprep.subr.mxu0 0.0
    %319 = vmatpush1.msra.mxu0 0.0
    %320 = vmatprep.subr.mxu0 0.0
    %321 = vmatpush1.msra.mxu0 0.0
    %322 = vmatprep.subr.mxu0 0.0
    %323 = vmatpush1.msra.mxu0 0.0
    %324 = vmatprep.subr.mxu0 0.0
    %325 = vmatpush1.msra.mxu0 0.0
    %326 = vmatprep.subr.mxu0 0.0
    %327 = vmatpush1.msra.mxu0 0.0
    %328 = vmatprep.subr.mxu0 0.0
    %329 = vmatpush1.msra.mxu0 0.0
    %330 = vmatprep.subr.mxu0 0.0
    %331 = vmatpush1.msra.mxu0 0.0
    %332 = vmatprep.subr.mxu0 0.0
    %333 = vmatpush1.msra.mxu0 0.0
    %334 = vmatprep.subr.mxu0 0.0
    %335 = vmatpush1.msra.mxu0 0.0
    %336 = vmatprep.subr.mxu0 0.0
    %337 = vmatpush1.msra.mxu0 0.0
    %338 = vmatprep.subr.mxu0 0.0
    %339 = vmatpush1.msra.mxu0 0.0
    %340 = vmatprep.subr.mxu0 0.0
    %341 = vmatpush1.msra.mxu0 0.0
    %342 = vmatprep.subr.mxu0 0.0
    %343 = vmatpush1.msra.mxu0 0.0
    %344 = vmatprep.subr.mxu0 0.0
    %345 = vmatpush1.msra.mxu0 0.0
    %346 = vmatprep.subr.mxu0 0.0
    %347 = vmatpush1.msra.mxu0 0.0
    %348 = vmatprep.subr.mxu0 0.0
    %349 = vmatpush1.msra.mxu0 0.0
    %350 = vmatprep.subr.mxu0 0.0
    %351 = vmatpush1.msra.mxu0 0.0
    %352 = vmatprep.subr.mxu0 0.0
    %353 = vmatpush1.msra.mxu0 0.0
    %354 = vmatprep.subr.mxu0 0.0
    %355 = vmatpush1.msra.mxu0 0.0
    %356 = vmatprep.subr.mxu0 0.0
    %357 = vmatpush1.msra.mxu0 0.0
    %358 = vmatprep.subr.mxu0 0.0
    %359 = vmatpush1.msra.mxu0 0.0
    %360 = vmatprep.mubr.f32.mxu0 0.0
    %361 = vmatmul.mubr.f32.gmra.mrb[0].mxu0 %v215
    %v362 = vpop.f32.mrb[0].mxu0
    %v363 = vadd.f32 %v295, %v362
    %v364 = vpop.f32.mrb[0].mxu0
    %365 = vdwg.mxu0
    %v366 = vmax.f32 %v363, 0.0
    %s367 = scalar_lea.vmem %s3, 136
    %v368 = vld [vmem:[%s367] sm:$0xff]
    %v369 = vld [vmem:[%s367 + $0x8] sm:$0xff]
    %v370 = vld [vmem:[%s367 + $0x10] sm:$0xff]
    %v371 = vld [vmem:[%s367 + $0x18] sm:$0xff]
    %v372 = vld [vmem:[%s367 + $0x20] sm:$0xff]
    %v373 = vld [vmem:[%s367 + $0x28] sm:$0xff]
    %v374 = vld [vmem:[%s367 + $0x30] sm:$0xff]
    %v375 = vld [vmem:[%s367 + $0x38] sm:$0xff]
    %v376 = vld [vmem:[%s367 + $0x40] sm:$0xff]
    %v377 = vld [vmem:[%s367 + $0x48] sm:$0xff]
    %v378 = vld [vmem:[%s367 + $0x50] sm:$0xff]
    %v379 = vld [vmem:[%s367 + $0x58] sm:$0xff]
    %v380 = vld [vmem:[%s367 + $0x60] sm:$0xff]
    %v381 = vld [vmem:[%s367 + $0x68] sm:$0xff]
    %v382 = vld [vmem:[%s367 + $0x70] sm:$0xff]
    %v383 = vld [vmem:[%s367 + $0x78] sm:$0xff]
    %v384 = vld [vmem:[%s367 + $0x80] sm:$0x1]
    %v385 = vlaneseq
    %v386 = vshrl.u32 %v385, 7
    %v387 = vsub.s32 0, %v386
    %v388 = vrot.slane %v384, %v387
    %389 = vmatprep.subr.mxu0 0.0
    %390 = vmatpush1.msra.mxu0 %v368
    %391 = vmatprep.subr.mxu0 0.0
    %392 = vmatpush1.msra.mxu0 %v369
    %393 = vmatprep.subr.mxu0 0.0
    %394 = vmatpush1.msra.mxu0 %v370
    %395 = vmatprep.subr.mxu0 0.0
    %396 = vmatpush1.msra.mxu0 %v371
    %397 = vmatprep.subr.mxu0 0.0
    %398 = vmatpush1.msra.mxu0 %v372
    %399 = vmatprep.subr.mxu0 0.0
    %400 = vmatpush1.msra.mxu0 %v373
    %401 = vmatprep.subr.mxu0 0.0
    %402 = vmatpush1.msra.mxu0 %v374
    %403 = vmatprep.subr.mxu0 0.0
    %404 = vmatpush1.msra.mxu0 %v375
    %405 = vmatprep.subr.mxu0 0.0
    %406 = vmatpush1.msra.mxu0 %v376
    %407 = vmatprep.subr.mxu0 0.0
    %408 = vmatpush1.msra.mxu0 %v377
    %409 = vmatprep.subr.mxu0 0.0
    %410 = vmatpush1.msra.mxu0 %v378
    %411 = vmatprep.subr.mxu0 0.0
    %412 = vmatpush1.msra.mxu0 %v379
    %413 = vmatprep.subr.mxu0 0.0
    %414 = vmatpush1.msra.mxu0 %v380
    %415 = vmatprep.subr.mxu0 0.0
    %416 = vmatpush1.msra.mxu0 %v381
    %417 = vmatprep.subr.mxu0 0.0
    %418 = vmatpush1.msra.mxu0 %v382
    %419 = vmatprep.subr.mxu0 0.0
    %420 = vmatpush1.msra.mxu0 %v383
    %421 = vmatprep.subr.mxu0 0.0
    %422 = vmatpush1.msra.mxu0 0.0
    %423 = vmatprep.subr.mxu0 0.0
    %424 = vmatpush1.msra.mxu0 0.0
    %425 = vmatprep.subr.mxu0 0.0
    %426 = vmatpush1.msra.mxu0 0.0
    %427 = vmatprep.subr.mxu0 0.0
    %428 = vmatpush1.msra.mxu0 0.0
    %429 = vmatprep.subr.mxu0 0.0
    %430 = vmatpush1.msra.mxu0 0.0
    %431 = vmatprep.subr.mxu0 0.0
    %432 = vmatpush1.msra.mxu0 0.0
    %433 = vmatprep.subr.mxu0 0.0
    %434 = vmatpush1.msra.mxu0 0.0
    %435 = vmatprep.subr.mxu0 0.0
    %436 = vmatpush1.msra.mxu0 0.0
    %437 = vmatprep.subr.mxu0 0.0
    %438 = vmatpush1.msra.mxu0 0.0
    %439 = vmatprep.subr.mxu0 0.0
    %440 = vmatpush1.msra.mxu0 0.0
    %441 = vmatprep.subr.mxu0 0.0
    %442 = vmatpush1.msra.mxu0 0.0
    %443 = vmatprep.subr.mxu0 0.0
    %444 = vmatpush1.msra.mxu0 0.0
    %445 = vmatprep.subr.mxu0 0.0
    %446 = vmatpush1.msra.mxu0 0.0
    %447 = vmatprep.subr.mxu0 0.0
    %448 = vmatpush1.msra.mxu0 0.0
    %449 = vmatprep.subr.mxu0 0.0
    %450 = vmatpush1.msra.mxu0 0.0
    %451 = vmatprep.subr.mxu0 0.0
    %452 = vmatpush1.msra.mxu0 0.0
    %453 = vmatprep.mubr.f32.mxu0 0.0
    %454 = vmatmul.mubr.f32.gmra.mrb[0].mxu0 %v366
    %v455 = vpop.f32.mrb[0].mxu0
    %v456 = vadd.f32 %v388, %v455
    %v457 = vpop.f32.mrb[0].mxu0
    %458 = vdwg.mxu0
    %v459 = vmax.f32 %v456, 0.0
    %s460 = scalar_lea.vmem %s4, 24
    %v461 = vld [vmem:[%s460] sm:$0xff]
    %v462 = vld [vmem:[%s460 + $0x8] sm:$0xff]
    %v463 = vld [vmem:[%s460 + $0x10] sm:$0x1]
    %v464 = vlaneseq
    %v465 = vshrl.u32 %v464, 7
    %v466 = vsub.s32 0, %v465
    %v467 = vrot.slane %v463, %v466
    %v469 = vsel %vm213, %v459, 0
    %471 = vmatprep.subr.mxu0 0.0
    %472 = vmatpush1.msra.mxu0 %v461
    %473 = vmatprep.subr.mxu0 0.0
    %474 = vmatpush1.msra.mxu0 %v462
    %475 = vmatprep.subr.mxu0 0.0
    %476 = vmatpush1.msra.mxu0 0.0
    %477 = vmatprep.subr.mxu0 0.0
    %478 = vmatpush1.msra.mxu0 0.0
    %479 = vmatprep.subr.mxu0 0.0
    %480 = vmatpush1.msra.mxu0 0.0
    %481 = vmatprep.subr.mxu0 0.0
    %482 = vmatpush1.msra.mxu0 0.0
    %483 = vmatprep.subr.mxu0 0.0
    %484 = vmatpush1.msra.mxu0 0.0
    %485 = vmatprep.subr.mxu0 0.0
    %486 = vmatpush1.msra.mxu0 0.0
    %487 = vmatprep.subr.mxu0 0.0
    %488 = vmatpush1.msra.mxu0 0.0
    %489 = vmatprep.subr.mxu0 0.0
    %490 = vmatpush1.msra.mxu0 0.0
    %491 = vmatprep.subr.mxu0 0.0
    %492 = vmatpush1.msra.mxu0 0.0
    %493 = vmatprep.subr.mxu0 0.0
    %494 = vmatpush1.msra.mxu0 0.0
    %495 = vmatprep.subr.mxu0 0.0
    %496 = vmatpush1.msra.mxu0 0.0
    %497 = vmatprep.subr.mxu0 0.0
    %498 = vmatpush1.msra.mxu0 0.0
    %499 = vmatprep.subr.mxu0 0.0
    %500 = vmatpush1.msra.mxu0 0.0
    %501 = vmatprep.subr.mxu0 0.0
    %502 = vmatpush1.msra.mxu0 0.0
    %503 = vmatprep.subr.mxu0 0.0
    %504 = vmatpush1.msra.mxu0 0.0
    %505 = vmatprep.subr.mxu0 0.0
    %506 = vmatpush1.msra.mxu0 0.0
    %507 = vmatprep.subr.mxu0 0.0
    %508 = vmatpush1.msra.mxu0 0.0
    %509 = vmatprep.subr.mxu0 0.0
    %510 = vmatpush1.msra.mxu0 0.0
    %511 = vmatprep.subr.mxu0 0.0
    %512 = vmatpush1.msra.mxu0 0.0
    %513 = vmatprep.subr.mxu0 0.0
    %514 = vmatpush1.msra.mxu0 0.0
    %515 = vmatprep.subr.mxu0 0.0
    %516 = vmatpush1.msra.mxu0 0.0
    %517 = vmatprep.subr.mxu0 0.0
    %518 = vmatpush1.msra.mxu0 0.0
    %519 = vmatprep.subr.mxu0 0.0
    %520 = vmatpush1.msra.mxu0 0.0
    %521 = vmatprep.subr.mxu0 0.0
    %522 = vmatpush1.msra.mxu0 0.0
    %523 = vmatprep.subr.mxu0 0.0
    %524 = vmatpush1.msra.mxu0 0.0
    %525 = vmatprep.subr.mxu0 0.0
    %526 = vmatpush1.msra.mxu0 0.0
    %527 = vmatprep.subr.mxu0 0.0
    %528 = vmatpush1.msra.mxu0 0.0
    %529 = vmatprep.subr.mxu0 0.0
    %530 = vmatpush1.msra.mxu0 0.0
    %531 = vmatprep.subr.mxu0 0.0
    %532 = vmatpush1.msra.mxu0 0.0
    %533 = vmatprep.subr.mxu0 0.0
    %534 = vmatpush1.msra.mxu0 0.0
    %535 = vmatprep.mubr.f32.mxu0 0.0
    %536 = vmatmul.mubr.f32.gmra.mrb[0].mxu0 %v469
    %v537 = vpop.f32.mrb[0].mxu0
    %v538 = vadd.f32 %v467, %v537
    %v539 = vpop.f32.mrb[0].mxu0
    %540 = vdwg.mxu0
    %541 = vst [vmem:[#allocation2 + $0x8] sm:$0xff] %v538
    // Predicated region
    $region22: #{tpu_custom_call.1} parent=1 // pred_check
      _
    $region23: #{tpu_custom_call.1} parent=1 // pred_check_branch
      %543 = sbr.rel (0) target = $region25
    $region24: #{tpu_custom_call.1} parent=1 // pred_region
      %s545 = ssub.s32 256, 256
      %546 = vsyncadd [#allocation3], %s545
      %s548 = sshll.u32 [#allocation2], 4
      %s549 = int_to_ptr.vmem [resolvable:$true] %s548
      %551 = dma.vmem_to_hbm [thread:$0]  %s549, 256, %s5, [#allocation3]
    $region25: #{tpu_custom_call.1} parent=1 // pred_fallthru
      _
    // Predicated region
    $region26: #{tpu_custom_call.1} parent=1 // pred_check
      _
    $region27: #{tpu_custom_call.1} parent=1 // pred_check_branch
      %553 = sbr.rel (0) target = $region29
    $region28: #{tpu_custom_call.1} parent=1 // pred_region
      %554 = dma.done [#allocation3], 256
    $region29: #{tpu_custom_call.1} parent=1 // pred_fallthru
      _
    %555 = vsyncpa [#allocation3], 1

</llo_original>
